<compile_context>
chip_gen: v6e
topology: v6e:2x2x1
jax: 0.10.0
libtpu: 0.0.40
codegen_flags: <defaults>
</compile_context>

<pallas_src>
import math

import jax
import jax.numpy as jnp
from jax.experimental import pallas as pl
from jax.experimental.pallas import tpu as pltpu

INPUT_SIZE = 7        # len(features)
F_PAD = 8             # feature dim padded to 8 (zero column) for clean packing
HIDDEN_1 = 64
HIDDEN_2 = 32
OUTPUT_SIZE = 1
SOFTPLUS_THRESHOLD = 20.0  # PyTorch nn.Softplus default (beta=1)
LANE = 128


def _round_up(n, m):
    return ((n + m - 1) // m) * m


def _choose_tiling(batch, block_b):
    """Pick (padded_batch, tile_b) such that:
       * padded_batch is a multiple of 128 with waste bounded to < 512 columns,
       * tile_b is a multiple of 128 that divides padded_batch and <= block_b,
       * the grid has >= 2 blocks whenever possible (v7x megacore)."""
    base = _round_up(max(batch, 1), LANE)
    t_cap = max(block_b // LANE, 1)
    best = None  # (grid_steps, padded_batch, tile_b)
    for extra in range(4):                       # search padding 0..384 columns
        bp = base + extra * LANE
        n = bp // LANE
        for t in range(min(t_cap, n), 0, -1):
            if n % t != 0:
                continue
            if n >= 2 and n // t < 2:            # keep >= 2 blocks for v7x
                continue
            cand = (n // t, bp, t * LANE)
            if best is None or cand < best:
                best = cand
            break
    return best[1], best[2]


def _mlp_kernel(x_ref, w1_ref, b1_ref, w2_ref, b2_ref, w3_ref, b3_ref, o_ref):
    # Feature-major: batch on the lane (last) axis, everything lane-dense.
    x = x_ref[...]                                                   # (8, TB) bf16

    # fc1 + ReLU  (bf16 MXU operands, f32 accumulation; bias/ReLU in f32)
    h1 = jnp.dot(w1_ref[...], x, preferred_element_type=jnp.float32)
    h1 = jnp.maximum(h1 + b1_ref[...], 0.0)                          # (64, TB) f32

    # dropout(p=0.2): identity at inference time.

    # fc2 + ReLU
    h2 = jnp.dot(w2_ref[...], h1.astype(jnp.bfloat16),
                 preferred_element_type=jnp.float32)
    h2 = jnp.maximum(h2 + b2_ref[...], 0.0)                          # (32, TB) f32

    # fc3 off the MXU: VPU multiply + XLU sublane reduce (f32).
    z = jnp.sum(w3_ref[...] * h2, axis=0, keepdims=True) + b3_ref[...]  # (1, TB)

    # softplus with PyTorch's numerical threshold.
    sp = jnp.log1p(jnp.exp(jnp.minimum(z, SOFTPLUS_THRESHOLD)))
    o_ref[...] = jnp.where(z > SOFTPLUS_THRESHOLD, z, sp)


def hiker_predictor_forward(x, params, *, block_b=4096):
    """x: (B, 7) float array.  params: PyTorch-layout weights/biases (f32).
    Returns (B, 1) float32."""
    B = x.shape[0]
    Bp, TB = _choose_tiling(B, block_b)

    # Layout plumbing (once, in the wrapper): pad batch (->Bp) and features
    # (7->8, zeros), go feature-major, cast to bf16 (halves x DMA bytes).
    x32 = x.astype(jnp.float32)
    x32 = jnp.pad(x32, ((0, Bp - B), (0, F_PAD - INPUT_SIZE)))
    x_t = x32.T.astype(jnp.bfloat16)                                  # (8, Bp)

    # Weight prep: bf16 MXU operands for fc1/fc2; fc3 stays f32 as a column
    # for the VPU/XLU path.  Biases stay f32.
    w1 = jnp.pad(params["w1"], ((0, 0), (0, F_PAD - INPUT_SIZE))).astype(jnp.bfloat16)
    w2 = params["w2"].astype(jnp.bfloat16)
    w3 = params["w3"].reshape(HIDDEN_2, OUTPUT_SIZE).astype(jnp.float32)
    b1, b2, b3 = params["b1"], params["b2"], params["b3"]

    grid = (Bp // TB,)

    # Weights/biases: full blocks, constant index_map -> stay resident in VMEM.
    def const_spec(shape):
        return pl.BlockSpec(shape, lambda i: (0, 0))

    out_t = pl.pallas_call(
        _mlp_kernel,
        out_shape=jax.ShapeDtypeStruct((OUTPUT_SIZE, Bp), jnp.float32),
        grid_spec=pltpu.PrefetchScalarGridSpec(
            num_scalar_prefetch=0,
            grid=grid,
            in_specs=[
                pl.BlockSpec((F_PAD, TB), lambda i: (0, i)),         # x tile
                const_spec((HIDDEN_1, F_PAD)),                       # w1 (bf16)
                const_spec((HIDDEN_1, 1)),                           # b1 (f32)
                const_spec((HIDDEN_2, HIDDEN_1)),                    # w2 (bf16)
                const_spec((HIDDEN_2, 1)),                           # b2 (f32)
                const_spec((HIDDEN_2, OUTPUT_SIZE)),                 # w3 col (f32)
                const_spec((OUTPUT_SIZE, 1)),                        # b3 (f32)
            ],
            out_specs=pl.BlockSpec((OUTPUT_SIZE, TB), lambda i: (0, i)),
        ),
        compiler_params=pltpu.CompilerParams(
            dimension_semantics=("parallel",),                       # v7x: 2 TCs
        ),
    )(x_t, w1, b1, w2, b2, w3, b3)

    return out_t[:, :B].T                                            # (B, 1)


def init_params(key):
    """Deterministic init mimicking PyTorch nn.Linear default:
    U(-1/sqrt(fan_in), 1/sqrt(fan_in)) for weight and bias.
    Weights in PyTorch layout (out_features, in_features); biases (out, 1)."""
    def linear(k, fan_in, fan_out):
        kw, kb = jax.random.split(k)
        bound = 1.0 / math.sqrt(fan_in)
        w = jax.random.uniform(kw, (fan_out, fan_in), jnp.float32, -bound, bound)
        b = jax.random.uniform(kb, (fan_out, 1), jnp.float32, -bound, bound)
        return w, b

    k1, k2, k3 = jax.random.split(key, 3)
    w1, b1 = linear(k1, INPUT_SIZE, HIDDEN_1)
    w2, b2 = linear(k2, HIDDEN_1, HIDDEN_2)
    w3, b3 = linear(k3, HIDDEN_2, OUTPUT_SIZE)
    return {"w1": w1, "b1": b1, "w2": w2, "b2": b2, "w3": w3, "b3": b3}


def _reference_forward(x, params):
    """Pure-JAX reference mirroring the kernel's numerics
    (bf16 matmul operands, f32 accumulation, f32 fc3/epilogue)."""
    x_b = x.astype(jnp.bfloat16)
    w1_b = params["w1"].astype(jnp.bfloat16)
    w2_b = params["w2"].astype(jnp.bfloat16)
    h1 = jnp.dot(x_b, w1_b.T, preferred_element_type=jnp.float32) + params["b1"].T
    h1 = jnp.maximum(h1, 0.0)
    h2 = jnp.dot(h1.astype(jnp.bfloat16), w2_b.T,
                 preferred_element_type=jnp.float32) + params["b2"].T
    h2 = jnp.maximum(h2, 0.0)
    z = h2 @ params["w3"].T + params["b3"].T
    sp = jnp.log1p(jnp.exp(jnp.minimum(z, SOFTPLUS_THRESHOLD)))
    return jnp.where(z > SOFTPLUS_THRESHOLD, z, sp)


if __name__ == "__main__":
    key = jax.random.PRNGKey(0)
    k_params, k_x = jax.random.split(key)

    params = init_params(k_params)

    batch = 8
    x = jax.random.normal(k_x, (batch, INPUT_SIZE), dtype=jnp.float32)

    out = hiker_predictor_forward(x, params)
    out = jax.block_until_ready(out)

    ref = _reference_forward(x, params)
    assert out.shape == (batch, OUTPUT_SIZE)
    assert jnp.allclose(out, ref, atol=1e-3, rtol=1e-3)

    print("KERNEL_OK")
</pallas_src>

<mosaic_0001>
module attributes {stable_mosaic.version = 11 : i64} {
  func.func @_mlp_kernel(%arg0: i32, %arg1: memref<8x128xbf16, #tpu.memory_space<vmem>>, %arg2: memref<64x8xbf16, #tpu.memory_space<vmem>>, %arg3: memref<64x1xf32, #tpu.memory_space<vmem>>, %arg4: memref<32x64xbf16, #tpu.memory_space<vmem>>, %arg5: memref<32x1xf32, #tpu.memory_space<vmem>>, %arg6: memref<32x1xf32, #tpu.memory_space<vmem>>, %arg7: memref<1x1xf32, #tpu.memory_space<vmem>>, %arg8: memref<1x128xf32, #tpu.memory_space<vmem>>) attributes {dimension_semantics = [#tpu.dimension_semantics<parallel>], iteration_bounds = array<i64: 1>, scalar_prefetch = 0 : i64, scratch_operands = 0 : i64, tpu.core_type = #tpu.core_type<tc>, window_params = [{transform_indices = @transform_0, window_bounds = array<i64: 8, 128>}, {pipeline_mode = #tpu.pipeline_mode<synchronous>, transform_indices = @transform_1, window_bounds = array<i64: 64, 8>}, {pipeline_mode = #tpu.pipeline_mode<synchronous>, transform_indices = @transform_2, window_bounds = array<i64: 64, 1>}, {pipeline_mode = #tpu.pipeline_mode<synchronous>, transform_indices = @transform_3, window_bounds = array<i64: 32, 64>}, {pipeline_mode = #tpu.pipeline_mode<synchronous>, transform_indices = @transform_4, window_bounds = array<i64: 32, 1>}, {pipeline_mode = #tpu.pipeline_mode<synchronous>, transform_indices = @transform_5, window_bounds = array<i64: 32, 1>}, {pipeline_mode = #tpu.pipeline_mode<synchronous>, transform_indices = @transform_6, window_bounds = array<i64: 1, 1>}, {transform_indices = @transform_7, window_bounds = array<i64: 1, 128>}]} {
    %c0 = arith.constant 0 : index
    %c0_0 = arith.constant 0 : index
    %0 = vector.load %arg1[%c0, %c0_0] : memref<8x128xbf16, #tpu.memory_space<vmem>>, vector<8x128xbf16>
    %c0_1 = arith.constant 0 : index
    %c0_2 = arith.constant 0 : index
    %1 = vector.load %arg2[%c0_1, %c0_2] : memref<64x8xbf16, #tpu.memory_space<vmem>>, vector<64x8xbf16>
    %cst = arith.constant dense<0.000000e+00> : vector<64x128xf32>
    %2 = tpu.matmul %1, %0, %cst {dimension_numbers = #tpu.dot_dimension_numbers<[1], [0], [0], [1], [0, 0, 1, 1], [], []>} : vector<64x8xbf16>, vector<8x128xbf16>, vector<64x128xf32> -> vector<64x128xf32>
    %c0_3 = arith.constant 0 : index
    %c0_4 = arith.constant 0 : index
    %3 = vector.load %arg3[%c0_3, %c0_4] : memref<64x1xf32, #tpu.memory_space<vmem>>, vector<64x1xf32>
    %4 = vector.broadcast %3 : vector<64x1xf32> to vector<64x128xf32>
    %5 = arith.addf %2, %4 : vector<64x128xf32>
    %cst_5 = arith.constant 0.000000e+00 : f32
    %6 = vector.broadcast %cst_5 : f32 to vector<64x128xf32>
    %7 = arith.maximumf %5, %6 : vector<64x128xf32>
    %c0_6 = arith.constant 0 : index
    %c0_7 = arith.constant 0 : index
    %8 = vector.load %arg4[%c0_6, %c0_7] : memref<32x64xbf16, #tpu.memory_space<vmem>>, vector<32x64xbf16>
    %9 = arith.truncf %7 : vector<64x128xf32> to vector<64x128xbf16>
    %cst_8 = arith.constant dense<0.000000e+00> : vector<32x128xf32>
    %10 = tpu.matmul %8, %9, %cst_8 {dimension_numbers = #tpu.dot_dimension_numbers<[1], [0], [0], [1], [0, 0, 1, 1], [], []>} : vector<32x64xbf16>, vector<64x128xbf16>, vector<32x128xf32> -> vector<32x128xf32>
    %c0_9 = arith.constant 0 : index
    %c0_10 = arith.constant 0 : index
    %11 = vector.load %arg5[%c0_9, %c0_10] : memref<32x1xf32, #tpu.memory_space<vmem>>, vector<32x1xf32>
    %12 = vector.broadcast %11 : vector<32x1xf32> to vector<32x128xf32>
    %13 = arith.addf %10, %12 : vector<32x128xf32>
    %cst_11 = arith.constant 0.000000e+00 : f32
    %14 = vector.broadcast %cst_11 : f32 to vector<32x128xf32>
    %15 = arith.maximumf %13, %14 : vector<32x128xf32>
    %c0_12 = arith.constant 0 : index
    %c0_13 = arith.constant 0 : index
    %16 = vector.load %arg6[%c0_12, %c0_13] : memref<32x1xf32, #tpu.memory_space<vmem>>, vector<32x1xf32>
    %17 = vector.broadcast %16 : vector<32x1xf32> to vector<32x128xf32>
    %18 = arith.mulf %17, %15 : vector<32x128xf32>
    %cst_14 = arith.constant dense<0.000000e+00> : vector<128xf32>
    %19 = vector.multi_reduction <add>, %18, %cst_14 [0] : vector<32x128xf32> to vector<128xf32>
    %20 = vector.shape_cast %19 : vector<128xf32> to vector<1x128xf32>
    %c0_15 = arith.constant 0 : index
    %c0_16 = arith.constant 0 : index
    %21 = vector.load %arg7[%c0_15, %c0_16] : memref<1x1xf32, #tpu.memory_space<vmem>>, vector<1x1xf32>
    %22 = vector.broadcast %21 : vector<1x1xf32> to vector<1x128xf32>
    %23 = arith.addf %20, %22 : vector<1x128xf32>
    %cst_17 = arith.constant 2.000000e+01 : f32
    %24 = vector.broadcast %cst_17 : f32 to vector<1x128xf32>
    %25 = arith.minimumf %23, %24 : vector<1x128xf32>
    %26 = math.exp %25 : vector<1x128xf32>
    %27 = math.log1p %26 : vector<1x128xf32>
    %cst_18 = arith.constant 2.000000e+01 : f32
    %28 = vector.broadcast %cst_18 : f32 to vector<1x128xf32>
    %29 = arith.cmpf ogt, %23, %28 : vector<1x128xf32>
    %30 = arith.select %29, %23, %27 : vector<1x128xi1>, vector<1x128xf32>
    %c0_19 = arith.constant 0 : index
    %c0_20 = arith.constant 0 : index
    %31 = vector.load %arg8[%c0_19, %c0_20] : memref<1x128xf32, #tpu.memory_space<vmem>>, vector<1x128xf32>
    tpu.vector_store %arg8[%c0_19, %c0_20], %30 {strides = array<i32>} : memref<1x128xf32, #tpu.memory_space<vmem>>, vector<1x128xf32>,
    return
  }
  func.func @transform_0(%arg0: i32) -> (i32, i32) {
    %c0_i32 = arith.constant 0 : i32
    %c0_i32_0 = arith.constant 0 : i32
    return %c0_i32, %arg0 : i32, i32
  }
  func.func @transform_1(%arg0: i32) -> (i32, i32) {
    %c0_i32 = arith.constant 0 : i32
    %c0_i32_0 = arith.constant 0 : i32
    %c0_i32_1 = arith.constant 0 : i32
    return %c0_i32, %c0_i32_0 : i32, i32
  }
  func.func @transform_2(%arg0: i32) -> (i32, i32) {
    %c0_i32 = arith.constant 0 : i32
    %c0_i32_0 = arith.constant 0 : i32
    %c0_i32_1 = arith.constant 0 : i32
    return %c0_i32, %c0_i32_0 : i32, i32
  }
  func.func @transform_3(%arg0: i32) -> (i32, i32) {
    %c0_i32 = arith.constant 0 : i32
    %c0_i32_0 = arith.constant 0 : i32
    %c0_i32_1 = arith.constant 0 : i32
    return %c0_i32, %c0_i32_0 : i32, i32
  }
  func.func @transform_4(%arg0: i32) -> (i32, i32) {
    %c0_i32 = arith.constant 0 : i32
    %c0_i32_0 = arith.constant 0 : i32
    %c0_i32_1 = arith.constant 0 : i32
    return %c0_i32, %c0_i32_0 : i32, i32
  }
  func.func @transform_5(%arg0: i32) -> (i32, i32) {
    %c0_i32 = arith.constant 0 : i32
    %c0_i32_0 = arith.constant 0 : i32
    %c0_i32_1 = arith.constant 0 : i32
    return %c0_i32, %c0_i32_0 : i32, i32
  }
  func.func @transform_6(%arg0: i32) -> (i32, i32) {
    %c0_i32 = arith.constant 0 : i32
    %c0_i32_0 = arith.constant 0 : i32
    %c0_i32_1 = arith.constant 0 : i32
    return %c0_i32, %c0_i32_0 : i32, i32
  }
  func.func @transform_7(%arg0: i32) -> (i32, i32) {
    %c0_i32 = arith.constant 0 : i32
    %c0_i32_0 = arith.constant 0 : i32
    return %c0_i32, %arg0 : i32, i32
  }
}

</mosaic_0001>

<llo_original>
// kernel: tpu_custom_call.1
$region0: #{tpu_custom_call.1}
  #allocation0 [shape = 'u32[]', space=smem, size = 0x4, offset = 0x4, fixed_abs, tag = 'smem constant byte address 0x4 - core index']
  #allocation1 [shape = 'u32[144,128]{1,0:T(1,128)}', space=vmem, size = 0x12000, scoped, tag = 'internal scratch']
  #allocation2 [shape = 'f32[1,1]{1,0:T(1,128)S(1)}', space=vmem, size = 0x200, scoped, tag = 'scoped memory for tpu_custom_call.1']
  %s0 = inlined_call_operand.vmem [shape: bf16[8,128], index: 0, kind: input, shape index: {}]
  %s1 = inlined_call_operand.vmem [shape: bf16[64,8], index: 1, kind: input, shape index: {}]
  %s2 = inlined_call_operand.vmem [shape: f32[64,1], index: 2, kind: input, shape index: {}]
  %s3 = inlined_call_operand.vmem [shape: bf16[32,64], index: 3, kind: input, shape index: {}]
  %s4 = inlined_call_operand.vmem [shape: f32[32,1], index: 4, kind: input, shape index: {}]
  %s5 = inlined_call_operand.vmem [shape: f32[32,1], index: 5, kind: input, shape index: {}]
  %s6 = inlined_call_operand.<no memory space> [shape: f32[1,1], index: 6, kind: input, shape index: {}]
  %s7 = inlined_call_operand.hbm [shape: f32[1,128], index: 7, kind: output, shape index: {}]
  %s8 = sld [smem:[#allocation0]]
  $region38: #{tpu_custom_call.1} parent=0
    _
  %s10 = ssub.s32 1, %s8
  %s11 = scalar_select 0, %s10, %s8
  %v12 = vstv %s6
  %13 = vst [vmem:[#allocation2] sm:$0x1] %v12
  $region1: #{tpu_custom_call.1} parent=0
    #allocation3 [shape = 'u8[512]{0}', space=vmem, size = 0x400, scoped, tag = 'output window, operand 0, single buffered']
    #allocation4 [shape = 's32[1]{0}', space=sflag, size = 0x4, scoped, tag = 'scoped memory for tpu_custom_call.1']
    %14 = vsyncpa [#allocation4], 0
    // Predicated region
    $region2: #{tpu_custom_call.1} parent=1 // pred_check
      _
    $region3: #{tpu_custom_call.1} parent=1 // pred_check_branch
      %16 = sbr.rel (0) target = $region5
    $region4: #{tpu_custom_call.1} parent=1 // pred_region
      _
    $region5: #{tpu_custom_call.1} parent=1 // pred_fallthru
      _
    // Predicated region
    $region6: #{tpu_custom_call.1} parent=1 // pred_check
      _
    $region7: #{tpu_custom_call.1} parent=1 // pred_check_branch
      %18 = sbr.rel (0) target = $region9
    $region8: #{tpu_custom_call.1} parent=1 // pred_region
      _
    $region9: #{tpu_custom_call.1} parent=1 // pred_fallthru
      _
    // Predicated region
    $region10: #{tpu_custom_call.1} parent=1 // pred_check
      _
    $region11: #{tpu_custom_call.1} parent=1 // pred_check_branch
      %20 = sbr.rel (0) target = $region13
    $region12: #{tpu_custom_call.1} parent=1 // pred_region
      _
    $region13: #{tpu_custom_call.1} parent=1 // pred_fallthru
      _
    // Predicated region
    $region14: #{tpu_custom_call.1} parent=1 // pred_check
      _
    $region15: #{tpu_custom_call.1} parent=1 // pred_check_branch
      %22 = sbr.rel (0) target = $region17
    $region16: #{tpu_custom_call.1} parent=1 // pred_region
      _
    $region17: #{tpu_custom_call.1} parent=1 // pred_fallthru
      _
    // Predicated region
    $region18: #{tpu_custom_call.1} parent=1 // pred_check
      _
    $region19: #{tpu_custom_call.1} parent=1 // pred_check_branch
      %24 = sbr.rel (0) target = $region21
    $region20: #{tpu_custom_call.1} parent=1 // pred_region
      _
    $region21: #{tpu_custom_call.1} parent=1 // pred_fallthru
      _
    // Predicated region
    $region22: #{tpu_custom_call.1} parent=1 // pred_check
      _
    $region23: #{tpu_custom_call.1} parent=1 // pred_check_branch
      %26 = sbr.rel (0) target = $region25
    $region24: #{tpu_custom_call.1} parent=1 // pred_region
      _
    $region25: #{tpu_custom_call.1} parent=1 // pred_fallthru
      _
    // Predicated region
    $region26: #{tpu_custom_call.1} parent=1 // pred_check
      _
    $region27: #{tpu_custom_call.1} parent=1 // pred_check_branch
      %28 = sbr.rel (0) target = $region29
    $region28: #{tpu_custom_call.1} parent=1 // pred_region
      _
    $region29: #{tpu_custom_call.1} parent=1 // pred_fallthru
      _
    %v30 = vld [vmem:[%s0] sm:$0xf]
    %v31 = vld [vmem:[%s1] sm:$0xf]
    %v32 = vld [vmem:[%s1 + $0x4] sm:$0xf]
    %v33 = vld [vmem:[%s1 + $0x8] sm:$0xf]
    %v34 = vld [vmem:[%s1 + $0xc] sm:$0xf]
    %v35 = vld [vmem:[%s1 + $0x10] sm:$0xf]
    %v36 = vld [vmem:[%s1 + $0x14] sm:$0xf]
    %v37 = vld [vmem:[%s1 + $0x18] sm:$0xf]
    %v38 = vld [vmem:[%s1 + $0x1c] sm:$0xf]
    %v39 = vld [vmem:[%s2] sm:$0xff]
    %v40 = vld [vmem:[%s2 + $0x8] sm:$0xff]
    %v41 = vld [vmem:[%s2 + $0x10] sm:$0xff]
    %v42 = vld [vmem:[%s2 + $0x18] sm:$0xff]
    %v43 = vld [vmem:[%s2 + $0x20] sm:$0xff]
    %v44 = vld [vmem:[%s2 + $0x28] sm:$0xff]
    %v45 = vld [vmem:[%s2 + $0x30] sm:$0xff]
    %v46 = vld [vmem:[%s2 + $0x38] sm:$0xff]
    %48 = vset.pattern.permute.xlu0 0
    %49 = vperm.xlu0 %48, %v39
    %v50 = vpop.permute.xlu0 %49
    %53 = vset.pattern.permute.xlu0 0
    %54 = vperm.xlu0 %53, %v40
    %v55 = vpop.permute.xlu0 %54
    %58 = vset.pattern.permute.xlu0 0
    %59 = vperm.xlu0 %58, %v41
    %v60 = vpop.permute.xlu0 %59
    %63 = vset.pattern.permute.xlu0 0
    %64 = vperm.xlu0 %63, %v42
    %v65 = vpop.permute.xlu0 %64
    %68 = vset.pattern.permute.xlu0 0
    %69 = vperm.xlu0 %68, %v43
    %v70 = vpop.permute.xlu0 %69
    %73 = vset.pattern.permute.xlu0 0
    %74 = vperm.xlu0 %73, %v44
    %v75 = vpop.permute.xlu0 %74
    %78 = vset.pattern.permute.xlu0 0
    %79 = vperm.xlu0 %78, %v45
    %v80 = vpop.permute.xlu0 %79
    %83 = vset.pattern.permute.xlu0 0
    %84 = vperm.xlu0 %83, %v46
    %v85 = vpop.permute.xlu0 %84
    %v95 = vunpack.c.l.b16 %v31
    %v96 = vunpack.c.l.b16 %v32
    %v97 = vunpack.c.l.b16 %v33
    %v98 = vunpack.c.l.b16 %v34
    %v99 = vunpack.c.l.b16 %v35
    %v100 = vunpack.c.l.b16 %v36
    %v101 = vunpack.c.l.b16 %v37
    %v102 = vunpack.c.l.b16 %v38
    %v103 = vpack.c.b16 %v96, %v95
    %v104 = vpack.c.b16 %v98, %v97
    %v105 = vpack.c.b16 %v100, %v99
    %v106 = vpack.c.b16 %v102, %v101
    %vm107 = vcmask 64512
    %v109 = vsel %vm107, %v103, 0
    %v112 = vsel %vm107, %v104, 0
    %v115 = vsel %vm107, %v105, 0
    %v118 = vsel %vm107, %v106, 0
    %vm120 = vcmask 1043456
    %v122 = vsel %vm120, %v30, 0
    %124 = vmatprep.subr.bf16.mxu0 0
    %125 = vmatpush1.bf16.msra.mxu0 0
    %126 = vmatprep.subr.bf16.mxu0 0
    %127 = vmatpush1.bf16.msra.mxu0 0
    %128 = vmatprep.subr.bf16.mxu0 0
    %129 = vmatpush1.bf16.msra.mxu0 0
    %130 = vmatprep.subr.bf16.mxu0 0
    %131 = vmatpush1.bf16.msra.mxu0 0
    %132 = vmatprep.subr.bf16.mxu0 0
    %133 = vmatpush1.bf16.msra.mxu0 0
    %134 = vmatprep.subr.bf16.mxu0 0
    %135 = vmatpush1.bf16.msra.mxu0 0
    %136 = vmatprep.subr.bf16.mxu0 0
    %137 = vmatpush1.bf16.msra.mxu0 0
    %138 = vmatprep.subr.bf16.mxu0 0
    %139 = vmatpush1.bf16.msra.mxu0 %v122
    %140 = vmatprep.subr.bf16.mxu0 0
    %141 = vmatpush2.bf16.msra.mxu0 0
    %142 = vmatprep.subr.bf16.mxu0 0
    %143 = vmatpush2.bf16.msra.mxu0 0
    %144 = vmatprep.subr.bf16.mxu0 0
    %145 = vmatpush2.bf16.msra.mxu0 0
    %146 = vmatprep.subr.bf16.mxu0 0
    %147 = vmatpush2.bf16.msra.mxu0 0
    %148 = vmatprep.subr.bf16.mxu0 0
    %149 = vmatpush2.bf16.msra.mxu0 0
    %150 = vmatprep.subr.bf16.mxu0 0
    %151 = vmatpush2.bf16.msra.mxu0 0
    %152 = vmatprep.subr.bf16.mxu0 0
    %153 = vmatpush2.bf16.msra.mxu0 0
    %154 = vmatprep.subr.bf16.mxu0 0
    %155 = vmatpush2.bf16.msra.mxu0 0
    %156 = vmatprep.mubr.bf16.mxu0 0
    %157 = vmatmul.mubr.bf16.gmra.mxu0 %v109
    %v158 = vpop.f32.mrf.mxu0
    %v159 = vadd.f32 %v50, %v158
    %v160 = vpop.f32.mrf.mxu0
    %v161 = vpop.f32.mrf.mxu0
    %v162 = vadd.f32 %v55, %v161
    %v163 = vpop.f32.mrf.mxu0
    %164 = vmatprep.mubr.bf16.mxu0 0
    %165 = vmatmul.mubr.bf16.gmra.mxu0 %v112
    %v166 = vpop.f32.mrf.mxu0
    %v167 = vadd.f32 %v60, %v166
    %v168 = vpop.f32.mrf.mxu0
    %v169 = vpop.f32.mrf.mxu0
    %v170 = vadd.f32 %v65, %v169
    %v171 = vpop.f32.mrf.mxu0
    %172 = vmatprep.mubr.bf16.mxu0 0
    %173 = vmatmul.mubr.bf16.gmra.mxu0 %v115
    %v174 = vpop.f32.mrf.mxu0
    %v175 = vadd.f32 %v70, %v174
    %v176 = vpop.f32.mrf.mxu0
    %v177 = vpop.f32.mrf.mxu0
    %v178 = vadd.f32 %v75, %v177
    %v179 = vpop.f32.mrf.mxu0
    %180 = vmatprep.mubr.bf16.mxu0 0
    %181 = vmatmul.mubr.bf16.gmra.mxu0 %v118
    %v182 = vpop.f32.mrf.mxu0
    %v183 = vadd.f32 %v80, %v182
    %v184 = vpop.f32.mrf.mxu0
    %v185 = vpop.f32.mrf.mxu0
    %v186 = vadd.f32 %v85, %v185
    %v187 = vpop.f32.mrf.mxu0
    %188 = vdwg.mxu0
    %v189 = vmax.f32 %v159, 0.0
    %v190 = vmax.f32 %v162, 0.0
    %v191 = vmax.f32 %v167, 0.0
    %v192 = vmax.f32 %v170, 0.0
    %v193 = vmax.f32 %v175, 0.0
    %v194 = vmax.f32 %v178, 0.0
    %v195 = vmax.f32 %v183, 0.0
    %v196 = vmax.f32 %v186, 0.0
    %v197 = vld [vmem:[%s3] sm:$0xf]
    %v198 = vld [vmem:[%s3 + $0x4] sm:$0xf]
    %v199 = vld [vmem:[%s3 + $0x8] sm:$0xf]
    %v200 = vld [vmem:[%s3 + $0xc] sm:$0xf]
    %v201 = vpack.c.bf16 %v190, %v189
    %v202 = vpack.c.bf16 %v192, %v191
    %v203 = vpack.c.bf16 %v194, %v193
    %v204 = vpack.c.bf16 %v196, %v195
    %v205 = vld [vmem:[%s4] sm:$0xff]
    %v206 = vld [vmem:[%s4 + $0x8] sm:$0xff]
    %v207 = vld [vmem:[%s4 + $0x10] sm:$0xff]
    %v208 = vld [vmem:[%s4 + $0x18] sm:$0xff]
    %210 = vset.pattern.permute.xlu0 0
    %211 = vperm.xlu0 %210, %v205
    %v212 = vpop.permute.xlu0 %211
    %215 = vset.pattern.permute.xlu0 0
    %216 = vperm.xlu0 %215, %v206
    %v217 = vpop.permute.xlu0 %216
    %220 = vset.pattern.permute.xlu0 0
    %221 = vperm.xlu0 %220, %v207
    %v222 = vpop.permute.xlu0 %221
    %225 = vset.pattern.permute.xlu0 0
    %226 = vperm.xlu0 %225, %v208
    %v227 = vpop.permute.xlu0 %226
    %v233 = vunpack.c.l.b16 %v197
    %v234 = vunpack.c.l.b16 %v198
    %v235 = vunpack.c.l.b16 %v199
    %v236 = vunpack.c.l.b16 %v200
    %v237 = vpack.c.b16 %v234, %v233
    %v238 = vpack.c.b16 %v236, %v235
    %vm239 = vcmask 523264
    %v241 = vsel %vm239, %v237, 0
    %v244 = vsel %vm239, %v238, 0
    %246 = vmatprep.subr.bf16.mxu0 0
    %247 = vmatpush1.bf16.msra.mxu0 0
    %248 = vmatprep.subr.bf16.mxu0 0
    %249 = vmatpush1.bf16.msra.mxu0 0
    %250 = vmatprep.subr.bf16.mxu0 0
    %251 = vmatpush1.bf16.msra.mxu0 0
    %252 = vmatprep.subr.bf16.mxu0 0
    %253 = vmatpush1.bf16.msra.mxu0 0
    %254 = vmatprep.subr.bf16.mxu0 0
    %255 = vmatpush1.bf16.msra.mxu0 %v204
    %256 = vmatprep.subr.bf16.mxu0 0
    %257 = vmatpush1.bf16.msra.mxu0 %v203
    %258 = vmatprep.subr.bf16.mxu0 0
    %259 = vmatpush1.bf16.msra.mxu0 %v202
    %260 = vmatprep.subr.bf16.mxu0 0
    %261 = vmatpush1.bf16.msra.mxu0 %v201
    %262 = vmatprep.subr.bf16.mxu0 0
    %263 = vmatpush2.bf16.msra.mxu0 0
    %264 = vmatprep.subr.bf16.mxu0 0
    %265 = vmatpush2.bf16.msra.mxu0 0
    %266 = vmatprep.subr.bf16.mxu0 0
    %267 = vmatpush2.bf16.msra.mxu0 0
    %268 = vmatprep.subr.bf16.mxu0 0
    %269 = vmatpush2.bf16.msra.mxu0 0
    %270 = vmatprep.subr.bf16.mxu0 0
    %271 = vmatpush2.bf16.msra.mxu0 0
    %272 = vmatprep.subr.bf16.mxu0 0
    %273 = vmatpush2.bf16.msra.mxu0 0
    %274 = vmatprep.subr.bf16.mxu0 0
    %275 = vmatpush2.bf16.msra.mxu0 0
    %276 = vmatprep.subr.bf16.mxu0 0
    %277 = vmatpush2.bf16.msra.mxu0 0
    %278 = vmatprep.mubr.bf16.mxu0 0
    %279 = vmatmul.mubr.bf16.gmra.mxu0 %v241
    %v280 = vpop.f32.mrf.mxu0
    %v281 = vadd.f32 %v212, %v280
    %v282 = vpop.f32.mrf.mxu0
    %v283 = vpop.f32.mrf.mxu0
    %v284 = vadd.f32 %v217, %v283
    %v285 = vpop.f32.mrf.mxu0
    %286 = vmatprep.mubr.bf16.mxu0 0
    %287 = vmatmul.mubr.bf16.gmra.mxu0 %v244
    %v288 = vpop.f32.mrf.mxu0
    %v289 = vadd.f32 %v222, %v288
    %v290 = vpop.f32.mrf.mxu0
    %v291 = vpop.f32.mrf.mxu0
    %v292 = vadd.f32 %v227, %v291
    %v293 = vpop.f32.mrf.mxu0
    %294 = vdwg.mxu0
    %v295 = vmax.f32 %v281, 0.0
    %v296 = vmax.f32 %v284, 0.0
    %v297 = vmax.f32 %v289, 0.0
    %v298 = vmax.f32 %v292, 0.0
    %v299 = vld [vmem:[%s5] sm:$0xff]
    %v300 = vld [vmem:[%s5 + $0x8] sm:$0xff]
    %v301 = vld [vmem:[%s5 + $0x10] sm:$0xff]
    %v302 = vld [vmem:[%s5 + $0x18] sm:$0xff]
    %304 = vset.pattern.permute.xlu0 0
    %305 = vperm.xlu0 %304, %v299
    %v306 = vpop.permute.xlu0 %305
    %309 = vset.pattern.permute.xlu0 0
    %310 = vperm.xlu0 %309, %v300
    %v311 = vpop.permute.xlu0 %310
    %314 = vset.pattern.permute.xlu0 0
    %315 = vperm.xlu0 %314, %v301
    %v316 = vpop.permute.xlu0 %315
    %319 = vset.pattern.permute.xlu0 0
    %320 = vperm.xlu0 %319, %v302
    %v321 = vpop.permute.xlu0 %320
    %v323 = vmul.f32 %v306, %v295
    %v324 = vmul.f32 %v311, %v296
    %v325 = vmul.f32 %v316, %v297
    %v326 = vmul.f32 %v321, %v298
    %v327 = vadd.f32 %v323, %v324
    %v328 = vadd.f32 %v327, %v325
    %v329 = vadd.f32 %v328, %v326
    %v330 = vrot.slane %v329, 4
    %v331 = vadd.f32 %v329, %v330
    %v332 = vrot.slane %v331, 2
    %v333 = vadd.f32 %v331, %v332
    %v334 = vrot.slane %v333, 1
    %v335 = vadd.f32 %v333, %v334
    %v336 = vld [vmem:[#allocation2] sm:$0x1]
    %338 = vset.pattern.permute.xlu0 0
    %339 = vperm.xlu0 %338, %v336
    %v340 = vpop.permute.xlu0 %339
    %v342 = vlaneseq
    %v343 = vshrl.u32 %v342, 7
    %v344 = vsub.s32 0, %v343
    %v345 = vrot.slane %v340, %v344
    %v346 = vadd.f32 %v335, %v345
    %v347 = vmin.f32 %v346, 20.0
    %v348 = vmul.f32 %v347, 1.442695
    %v349 = vpow.pop %v348
    %v350 = vadd.f32 %v349, 1.0
    %v351 = vlog2.pop %v350
    %v352 = vmul.f32 %v351, 0.6931472
    %v353 = vmul.f32 -0.5, %v349
    %v354 = vadd.f32 %v353, 1.0
    %v355 = vmul.f32 %v354, %v349
    %v356 = vand.u32 2147483647, %v349
    %vm357 = vcmp.lt.f32.partialorder %v356, 0.0004427343
    %v358 = vsel %vm357, %v355, %v352
    %vm359 = vcmp.gt.f32.partialorder %v346, 20.0
    %v360 = vsel %vm359, %v346, %v358
    %361 = vst [vmem:[#allocation3] sm:$0x1] %v360
    // Predicated region
    $region30: #{tpu_custom_call.1} parent=1 // pred_check
      _
    $region31: #{tpu_custom_call.1} parent=1 // pred_check_branch
      %363 = sbr.rel (0) target = $region33
    $region32: #{tpu_custom_call.1} parent=1 // pred_region
      %s365 = ssub.s32 16, 16
      %366 = vsyncadd [#allocation4], %s365
      %s368 = sshll.u32 [#allocation3], 4
      %s369 = int_to_ptr.vmem [resolvable:$true] %s368
      %371 = dma.vmem_to_hbm [thread:$0]  %s369, 16, %s7, [#allocation4]
    $region33: #{tpu_custom_call.1} parent=1 // pred_fallthru
      _
    // Predicated region
    $region34: #{tpu_custom_call.1} parent=1 // pred_check
      _
    $region35: #{tpu_custom_call.1} parent=1 // pred_check_branch
      %373 = sbr.rel (0) target = $region37
    $region36: #{tpu_custom_call.1} parent=1 // pred_region
      %374 = dma.done [#allocation4], 16
    $region37: #{tpu_custom_call.1} parent=1 // pred_fallthru
      _
    %375 = vsyncpa [#allocation4], 1

</llo_original>
